<compile_context>
chip_gen: v7x
topology: tpu7x:2x2x1
jax: 0.10.0
libtpu: 0.0.40
codegen_flags: <defaults>
</compile_context>

<pallas_src>
import jax
import jax.numpy as jnp
from jax.experimental import pallas as pl
from jax.experimental.pallas import tpu as pltpu

_WINDOW = 24                 # the module always repeats the last 24 time steps
_PIPELINE_BUFFERS = 4        # 2x double-buffered input + 2x double-buffered output


def _round_up(x: int, m: int) -> int:
    return ((x + m - 1) // m) * m


def _vmem_budget_bytes() -> int:
    """Per-generation VMEM budget for this call's buffers (review item 4)."""
    cap = 64 * 1024 * 1024  # conservative fallback = v7x physical VMEM
    try:
        info = pltpu.get_tpu_info()
        cap = int(getattr(info, "vmem_capacity_bytes", cap))
    except Exception:
        pass
    # v5e/v6e (128 MiB physical) -> 64 MiB limit; v7x (64 MiB) -> 32 MiB limit.
    return min(cap // 2, 64 * 1024 * 1024)


def _pick_row_tile(total_rows: int, lane_width: int, dtype, tile_bytes_cap: int) -> int:
    """Rows per block, sized against the *lane-padded* VMEM footprint (item 1)."""
    itemsize = jnp.dtype(dtype).itemsize
    # Sublane packing multiple: f32 -> 8, bf16 -> 16, int8/fp8 -> 32.
    sub_mult = max(8, 32 // max(1, itemsize))
    padded_row_bytes = _round_up(lane_width, 128) * itemsize  # lane padding!
    tr = max(1, tile_bytes_cap // padded_row_bytes)
    if tr >= total_rows:
        return total_rows
    tr = max(sub_mult, (tr // sub_mult) * sub_mult)
    return min(tr, total_rows)


def _copy_kernel(x_ref, o_ref):
    # Direct ref-to-ref copy of the current block (review item 5).
    o_ref[...] = x_ref[...]


def repeat_baseline(inputs: jax.Array, label_index: int, *,
                    tile_budget_bytes: int | None = None) -> jax.Array:
    """Pallas implementation of RepeatBaseline.forward.

    Args:
      inputs: (B, T, F) array, T >= 24.
      label_index: static int, feature column to select (0 <= label_index < F).
      tile_budget_bytes: optional override of the per-tile VMEM byte cap
        (used in tests to force a multi-step pipelined grid at small shapes).

    Returns:
      (B, 24, 1) array == inputs[:, -24:, label_index:label_index + 1]
    """
    B, T, F = inputs.shape
    assert T >= _WINDOW, "RepeatBaseline needs at least 24 time steps"
    assert isinstance(label_index, int) and 0 <= label_index < F

    # --- Review items 2/3: only the useful bytes ever reach the custom call.
    # Static XLA strided slice: (B, 24) single-column window.  This is the
    # minimum-size operand (and minimum-size temp) possible for this op.
    col2d = inputs[:, T - _WINDOW:, label_index]                # (B, 24)

    # --- Review item 6: present a lane-dense slab to the kernel when possible.
    flat_n = B * _WINDOW
    if flat_n % 128 == 0:
        lanes = 128
        arr = col2d.reshape(flat_n // 128, 128)                 # free, row-major
    else:
        lanes = _WINDOW                                         # == full last dim (legal)
        arr = col2d
    rows = arr.shape[0]

    # --- Review items 1/4: padding- and pipeline-aware tile sizing.
    budget = _vmem_budget_bytes()
    if tile_budget_bytes is None:
        # Keep (pipeline buffers) * tile within ~80% of the budget.
        tile_bytes_cap = max(1, (budget * 4) // (5 * _PIPELINE_BUFFERS))
    else:
        tile_bytes_cap = int(tile_budget_bytes)
    tr = _pick_row_tile(rows, lanes, arr.dtype, tile_bytes_cap)
    grid = (pl.cdiv(rows, tr),)

    out2d = pl.pallas_call(
        _copy_kernel,
        out_shape=jax.ShapeDtypeStruct(arr.shape, arr.dtype),
        grid=grid,
        in_specs=[pl.BlockSpec((tr, lanes), lambda i: (i, 0))],
        out_specs=pl.BlockSpec((tr, lanes), lambda i: (i, 0)),
        compiler_params=pltpu.CompilerParams(
            # Item 7: independent row tiles; consider pltpu.CORE_PARALLEL on
            # v7x if a profile shows a single busy TensorCore.
            dimension_semantics=("parallel",),
            vmem_limit_bytes=budget,
        ),
    )(arr)

    # Free layout plumbing back to the module's (B, 24, 1) output shape.
    return out2d.reshape(B, _WINDOW, 1)


if __name__ == "__main__":
    # The module has no learnable parameters (only label_index is stored),
    # so there is nothing to initialize beyond the inputs.
    root = jax.random.PRNGKey(0)
    k1, k2, k3 = jax.random.split(root, 3)

    def check(key, B, T, F, label_index, tile_budget_bytes=None):
        x = jax.random.normal(key, (B, T, F), dtype=jnp.float32)
        out = repeat_baseline(x, label_index, tile_budget_bytes=tile_budget_bytes)
        out = jax.block_until_ready(out)
        ref = x[:, -_WINDOW:, label_index:label_index + 1]      # exact PyTorch semantics
        assert out.shape == (B, _WINDOW, 1), out.shape
        assert out.dtype == x.dtype
        assert jnp.array_equal(out, ref), "mismatch vs reference slice"

    # 1) Small batch -> fallback (B*24 % 128 != 0), masked-store path.
    check(k1, B=2, T=32, F=4, label_index=2)
    # 2) B*24 multiple of 128 -> lane-dense (rows, 128) path, single block.
    check(k2, B=16, T=48, F=5, label_index=3)
    # 3) Forced tiny tile budget -> multi-step, auto-pipelined grid with a
    #    partial final block (exercises the tiled path at small shapes).
    check(k3, B=128, T=40, F=4, label_index=1, tile_budget_bytes=8 * 1024)

    print("KERNEL_OK")
</pallas_src>

<mosaic_0001>
module attributes {stable_mosaic.version = 11 : i64} {
  func.func @_copy_kernel(%arg0: i32, %arg1: memref<2x24xf32, #tpu.memory_space<vmem>>, %arg2: memref<2x24xf32, #tpu.memory_space<vmem>>) attributes {dimension_semantics = [#tpu.dimension_semantics<parallel>], iteration_bounds = array<i64: 1>, scalar_prefetch = 0 : i64, scratch_operands = 0 : i64, tpu.core_type = #tpu.core_type<tc>, window_params = [{transform_indices = @transform_0, window_bounds = array<i64: 2, 24>}, {transform_indices = @transform_1, window_bounds = array<i64: 2, 24>}]} {
    %c0 = arith.constant 0 : index
    %c0_0 = arith.constant 0 : index
    %0 = vector.load %arg1[%c0, %c0_0] : memref<2x24xf32, #tpu.memory_space<vmem>>, vector<2x24xf32>
    %c0_1 = arith.constant 0 : index
    %c0_2 = arith.constant 0 : index
    %1 = vector.load %arg2[%c0_1, %c0_2] : memref<2x24xf32, #tpu.memory_space<vmem>>, vector<2x24xf32>
    tpu.vector_store %arg2[%c0_1, %c0_2], %0 {strides = array<i32>} : memref<2x24xf32, #tpu.memory_space<vmem>>, vector<2x24xf32>,
    return
  }
  func.func @transform_0(%arg0: i32) -> (i32, i32) {
    %c0_i32 = arith.constant 0 : i32
    %c0_i32_0 = arith.constant 0 : i32
    return %arg0, %c0_i32 : i32, i32
  }
  func.func @transform_1(%arg0: i32) -> (i32, i32) {
    %c0_i32 = arith.constant 0 : i32
    %c0_i32_0 = arith.constant 0 : i32
    return %arg0, %c0_i32 : i32, i32
  }
}

</mosaic_0001>

<llo_original>
// kernel: tpu_custom_call.1
$region0: #{tpu_custom_call.1}
  #allocation0 [shape = 'u32[]', space=smem, size = 0x4, offset = 0x4, fixed_abs, tag = 'smem constant byte address 0x4 - core index']
  #allocation1 [shape = 'u32[144,128]{1,0:T(1,128)}', space=vmem, size = 0x12000, scoped, tag = 'internal scratch']
  %s0 = inlined_call_operand.hbm [shape: f32[2,24], index: 0, kind: input, shape index: {}]
  %s1 = inlined_call_operand.hbm [shape: f32[2,24], index: 1, kind: output, shape index: {}]
  %s2 = sld [smem:[#allocation0]]
  $region18: #{tpu_custom_call.1} parent=0
    _
  %s4 = ssub.s32 1, %s2
  %s5 = scalar_select 0, %s4, %s2
  $region1: #{tpu_custom_call.1} parent=0
    #allocation2 [shape = 'u8[1024]{0}', space=vmem, size = 0x400, scoped, tag = 'input window, operand 0, single buffered']
    #allocation3 [shape = 's32[1]{0}', space=sflag, size = 0x4, scoped, tag = 'scoped memory for tpu_custom_call.1']
    #allocation4 [shape = 's32[1]{0}', space=sflag, size = 0x4, scoped, tag = 'scoped memory for tpu_custom_call.1']
    #allocation5 [shape = 'u8[1024]{0}', space=vmem, size = 0x400, scoped, tag = 'output window, operand 0, single buffered']
    %6 = vsyncpa [#allocation3], 0
    %7 = vsyncpa [#allocation4], 0
    // Predicated region
    $region2: #{tpu_custom_call.1} parent=1 // pred_check
      _
    $region3: #{tpu_custom_call.1} parent=1 // pred_check_branch
      %9 = sbr.rel (0) target = $region5
    $region4: #{tpu_custom_call.1} parent=1 // pred_region
      %s11 = ssub.s32 32, 32
      %12 = vsyncadd [#allocation3], %s11
      %s14 = sshll.u32 [#allocation2], 4
      %s15 = int_to_ptr.vmem [resolvable:$true] %s14
      %17 = dma.hbm_to_vmem [thread:$0]  %s0, 32, %s15, [#allocation3]
    $region5: #{tpu_custom_call.1} parent=1 // pred_fallthru
      _
    // Predicated region
    $region6: #{tpu_custom_call.1} parent=1 // pred_check
      _
    $region7: #{tpu_custom_call.1} parent=1 // pred_check_branch
      %19 = sbr.rel (0) target = $region9
    $region8: #{tpu_custom_call.1} parent=1 // pred_region
      %20 = dma.done [#allocation3], 32
    $region9: #{tpu_custom_call.1} parent=1 // pred_fallthru
      _
    %v21 = vld [vmem:[#allocation2] sm:$0x3]
    %vm22 = vcmask 189440
    %23 = vst.msk [vmem:[#allocation5] sm:$0x3] %vm22, %v21
    // Predicated region
    $region10: #{tpu_custom_call.1} parent=1 // pred_check
      _
    $region11: #{tpu_custom_call.1} parent=1 // pred_check_branch
      %25 = sbr.rel (0) target = $region13
    $region12: #{tpu_custom_call.1} parent=1 // pred_region
      %s27 = ssub.s32 32, 32
      %28 = vsyncadd [#allocation4], %s27
      %s30 = sshll.u32 [#allocation5], 4
      %s31 = int_to_ptr.vmem [resolvable:$true] %s30
      %33 = dma.vmem_to_hbm [thread:$0]  %s31, 32, %s1, [#allocation4]
    $region13: #{tpu_custom_call.1} parent=1 // pred_fallthru
      _
    // Predicated region
    $region14: #{tpu_custom_call.1} parent=1 // pred_check
      _
    $region15: #{tpu_custom_call.1} parent=1 // pred_check_branch
      %35 = sbr.rel (0) target = $region17
    $region16: #{tpu_custom_call.1} parent=1 // pred_region
      %36 = dma.done [#allocation4], 32
    $region17: #{tpu_custom_call.1} parent=1 // pred_fallthru
      _
    %37 = vsyncpa [#allocation3], 1
    %38 = vsyncpa [#allocation4], 1

</llo_original>
